<compile_context>
chip_gen: v5e
topology: v5e:2x2
jax: 0.10.0
libtpu: 0.0.40
codegen_flags: <defaults>
</compile_context>

<pallas_src>
import functools

import jax
import jax.numpy as jnp
from jax.experimental import pallas as pl
from jax.experimental.pallas import tpu as pltpu

KERNEL_BANDWIDTHS = (0.5, 1.0)  # matches MKMMDLoss(kernels=[0.5, 1.0])


def _round_up(x, m):
    return ((x + m - 1) // m) * m


def _mkmmd_kernel(z_ref, out_ref, *, ns, nt):
    z = z_ref[...]                                    # (P, D) f32, pad rows are zero
    p = z.shape[0]

    # One fused Gram matrix on the MXU: G[i, j] = <z_i, z_j>
    # (contract feature dim of both operands -> no explicit transpose).
    g = jax.lax.dot_general(
        z, z, (((1,), (1,)), ((), ())), preferred_element_type=jnp.float32
    )                                                 # (P, P)

    # Half squared norms straight from z (P*D work, not P^2); (1,P) view via a
    # tiny 2-D transpose of the (P,1) vector.
    h_col = 0.5 * jnp.sum(z * z, axis=1, keepdims=True)   # (P, 1)
    h_row = jnp.transpose(h_col, (1, 0))                  # (1, P)

    # arg = -l2/2 = G - ||x||^2/2 - ||y||^2/2, clamped against round-off > 0.
    arg = jnp.minimum(g - h_col - h_row, 0.0)

    # Bandwidths (0.5, 1.0): exp(-l2) + exp(-l2/2) = e*(1+e), e = exp(-l2/2).
    # Exactly one EUP transcendental per element.
    e = jnp.exp(arg)
    k = e * (1.0 + e)

    # Rank-1 sign/count weights: a_i = +1/Ns (source), -1/Nt (target), 0 (pad).
    # a_i * a_j == +1/Ns^2 (SS), +1/Nt^2 (TT), -1/(Ns*Nt) (ST & TS), 0 (pad),
    # so sum_ij a_i K_ij a_j == mean(K_ss) + mean(K_tt) - 2*mean(K_st).
    idx_col = jax.lax.broadcasted_iota(jnp.int32, (p, 1), 0)
    idx_row = jax.lax.broadcasted_iota(jnp.int32, (1, p), 1)
    a_col = jnp.where(idx_col < ns, 1.0 / ns,
                      jnp.where(idx_col < ns + nt, -1.0 / nt, 0.0))
    a_row = jnp.where(idx_row < ns, 1.0 / ns,
                      jnp.where(idx_row < ns + nt, -1.0 / nt, 0.0))

    # Lane-reduce K * a_row first (single P^2 multiply), finish on (P,1).
    s = jnp.sum(k * a_row, axis=1, keepdims=True)     # (P, 1)
    out_ref[0, 0] = jnp.sum(s * a_col)


def mkmmd_loss(source, target):
    """source: (Ns, D), target: (Nt, D) -> scalar float32 MK-MMD loss."""
    # Guard: the in-kernel e*(1+e) fusion is exact only for bandwidths (0.5, 1.0).
    assert tuple(KERNEL_BANDWIDTHS) == (0.5, 1.0), (
        "kernel fuses exp terms for bandwidths (0.5, 1.0) only")
    ns, d = source.shape
    nt, d2 = target.shape
    assert d == d2, "source/target feature dims must match"

    # Fuse the two inputs; pad rows only to the f32 sublane multiple of 8
    # (pad rows carry weight 0 inside the kernel).  No lane (128) padding.
    z = jnp.concatenate(
        [source.astype(jnp.float32), target.astype(jnp.float32)], axis=0
    )
    n = ns + nt
    p = _round_up(n, 8)
    if p != n:
        z = jnp.pad(z, ((0, p - n), (0, 0)))

    out = pl.pallas_call(
        functools.partial(_mkmmd_kernel, ns=ns, nt=nt),
        out_shape=jax.ShapeDtypeStruct((1, 1), jnp.float32),
        in_specs=[pl.BlockSpec(memory_space=pltpu.MemorySpace.VMEM)],
        out_specs=pl.BlockSpec(memory_space=pltpu.MemorySpace.SMEM),
    )(z)
    return out[0, 0]


def _mkmmd_ref(source, target):
    # pure-JAX reference matching the PyTorch broadcast formulation
    def gk(x, y):
        delta = x[:, None, :] - y[None, :, :]
        l2 = jnp.sum(delta * delta, axis=2)
        return sum(jnp.exp(-l2 / (2.0 * k)) for k in KERNEL_BANDWIDTHS)

    return (gk(source, source).mean()
            + gk(target, target).mean()
            - 2.0 * gk(source, target).mean())


if __name__ == "__main__":
    key = jax.random.PRNGKey(0)
    k_src, k_tgt = jax.random.split(key)
    Ns, Nt, D = 16, 16, 32
    source = jax.random.normal(k_src, (Ns, D), dtype=jnp.float32)
    target = jax.random.normal(k_tgt, (Nt, D), dtype=jnp.float32) + 0.5

    loss = jax.block_until_ready(mkmmd_loss(source, target))
    ref = jax.block_until_ready(_mkmmd_ref(source, target))
    assert jnp.allclose(loss, ref, rtol=1e-5, atol=1e-5), (loss, ref)
    print("KERNEL_OK")
</pallas_src>

<mosaic_0001>
module attributes {stable_mosaic.version = 11 : i64} {
  func.func @_mkmmd_kernel(%arg0: memref<32x32xf32, #tpu.memory_space<vmem>>, %arg1: memref<1x1xf32, #tpu.memory_space<smem>>) attributes {dimension_semantics = [], scalar_prefetch = 0 : i64, scratch_operands = 0 : i64, tpu.core_type = #tpu.core_type<tc>} {
    %c0 = arith.constant 0 : index
    %c0_0 = arith.constant 0 : index
    %0 = vector.load %arg0[%c0, %c0_0] : memref<32x32xf32, #tpu.memory_space<vmem>>, vector<32x32xf32>
    %cst = arith.constant dense<0.000000e+00> : vector<32x32xf32>
    %1 = tpu.matmul %0, %0, %cst {dimension_numbers = #tpu.dot_dimension_numbers<[1], [1], [0], [0], [0, 0, 1, 0], [], []>} : vector<32x32xf32>, vector<32x32xf32>, vector<32x32xf32> -> vector<32x32xf32>
    %2 = arith.mulf %0, %0 : vector<32x32xf32>
    %cst_1 = arith.constant dense<0.000000e+00> : vector<32xf32>
    %3 = vector.multi_reduction <add>, %2, %cst_1 [1] : vector<32x32xf32> to vector<32xf32>
    %4 = vector.shape_cast %3 : vector<32xf32> to vector<32x1xf32>
    %cst_2 = arith.constant 5.000000e-01 : f32
    %5 = vector.broadcast %cst_2 : f32 to vector<32x1xf32>
    %6 = arith.mulf %5, %4 : vector<32x1xf32>
    %7 = tpu.transpose %6, [1, 0] : vector<32x1xf32> -> vector<1x32xf32>
    %8 = vector.broadcast %6 : vector<32x1xf32> to vector<32x32xf32>
    %9 = arith.subf %1, %8 : vector<32x32xf32>
    %10 = vector.broadcast %7 : vector<1x32xf32> to vector<32x32xf32>
    %11 = arith.subf %9, %10 : vector<32x32xf32>
    %cst_3 = arith.constant 0.000000e+00 : f32
    %12 = vector.broadcast %cst_3 : f32 to vector<32x32xf32>
    %13 = arith.minimumf %11, %12 : vector<32x32xf32>
    %14 = math.exp %13 : vector<32x32xf32>
    %cst_4 = arith.constant 1.000000e+00 : f32
    %15 = vector.broadcast %cst_4 : f32 to vector<32x32xf32>
    %16 = arith.addf %15, %14 : vector<32x32xf32>
    %17 = arith.mulf %14, %16 : vector<32x32xf32>
    %18 = tpu.iota {dimensions = array<i32: 0>} : vector<32x1xi32>
    %19 = tpu.iota {dimensions = array<i32: 1>} : vector<1x32xi32>
    %c16_i32 = arith.constant 16 : i32
    %20 = vector.broadcast %c16_i32 : i32 to vector<32x1xi32>
    %21 = arith.cmpi slt, %18, %20 : vector<32x1xi32>
    %c32_i32 = arith.constant 32 : i32
    %22 = vector.broadcast %c32_i32 : i32 to vector<32x1xi32>
    %23 = arith.cmpi slt, %18, %22 : vector<32x1xi32>
    %cst_5 = arith.constant -6.250000e-02 : f32
    %cst_6 = arith.constant 0.000000e+00 : f32
    %24 = vector.broadcast %cst_5 : f32 to vector<32x1xf32>
    %25 = vector.broadcast %cst_6 : f32 to vector<32x1xf32>
    %26 = arith.select %23, %24, %25 : vector<32x1xi1>, vector<32x1xf32>
    %cst_7 = arith.constant 6.250000e-02 : f32
    %27 = vector.broadcast %cst_7 : f32 to vector<32x1xf32>
    %28 = arith.select %21, %27, %26 : vector<32x1xi1>, vector<32x1xf32>
    %c16_i32_8 = arith.constant 16 : i32
    %29 = vector.broadcast %c16_i32_8 : i32 to vector<1x32xi32>
    %30 = arith.cmpi slt, %19, %29 : vector<1x32xi32>
    %c32_i32_9 = arith.constant 32 : i32
    %31 = vector.broadcast %c32_i32_9 : i32 to vector<1x32xi32>
    %32 = arith.cmpi slt, %19, %31 : vector<1x32xi32>
    %cst_10 = arith.constant -6.250000e-02 : f32
    %cst_11 = arith.constant 0.000000e+00 : f32
    %33 = vector.broadcast %cst_10 : f32 to vector<1x32xf32>
    %34 = vector.broadcast %cst_11 : f32 to vector<1x32xf32>
    %35 = arith.select %32, %33, %34 : vector<1x32xi1>, vector<1x32xf32>
    %cst_12 = arith.constant 6.250000e-02 : f32
    %36 = vector.broadcast %cst_12 : f32 to vector<1x32xf32>
    %37 = arith.select %30, %36, %35 : vector<1x32xi1>, vector<1x32xf32>
    %38 = vector.broadcast %37 : vector<1x32xf32> to vector<32x32xf32>
    %39 = arith.mulf %17, %38 : vector<32x32xf32>
    %cst_13 = arith.constant dense<0.000000e+00> : vector<32xf32>
    %40 = vector.multi_reduction <add>, %39, %cst_13 [1] : vector<32x32xf32> to vector<32xf32>
    %41 = vector.shape_cast %40 : vector<32xf32> to vector<32x1xf32>
    %42 = arith.mulf %41, %28 : vector<32x1xf32>
    %43 = vector.shape_cast %42 : vector<32x1xf32> to vector<1x32x1xf32>
    %cst_14 = arith.constant dense<0.000000e+00> : vector<1xf32>
    %44 = vector.multi_reduction <add>, %43, %cst_14 [1, 2] : vector<1x32x1xf32> to vector<1xf32>
    %45 = vector.shape_cast %44 : vector<1xf32> to vector<1x1x1xf32>
    %46 = vector.extract %45[0, 0, 0] : f32 from vector<1x1x1xf32>
    %c0_15 = arith.constant 0 : index
    %c0_16 = arith.constant 0 : index
    %47 = memref.load %arg1[%c0_15, %c0_16] : memref<1x1xf32, #tpu.memory_space<smem>>
    memref.store %46, %arg1[%c0_15, %c0_16] : memref<1x1xf32, #tpu.memory_space<smem>>
    return
  }
}

</mosaic_0001>

<llo_original>
// kernel: tpu_custom_call.1
$region0: #{tpu_custom_call.1}
  #allocation0 [shape = 'u32[]', space=smem, size = 0x4, offset = 0x4, fixed_abs, tag = 'smem constant byte address 0x4 - core index']
  #allocation1 [shape = 'u32[72,128]{1,0:T(1,128)}', space=vmem, size = 0x9000, scoped, tag = 'internal scratch']
  %s0 = inlined_call_operand.hbm [shape: f32[32,32], index: 0, kind: input, shape index: {}]
  %s1 = inlined_call_operand.hbm [shape: f32[1,1], index: 1, kind: output, shape index: {}]
  %s2 = sld [smem:[#allocation0]]
  $region18: #{tpu_custom_call.1} parent=0
    _
  %s4 = ssub.s32 1, %s2
  %s5 = scalar_select 0, %s4, %s2
  $region1: #{tpu_custom_call.1} parent=0
    #allocation2 [shape = 'u8[16384]{0}', space=vmem, size = 0x4000, scoped, tag = 'input window, operand 0, single buffered']
    #allocation3 [shape = 's32[1]{0}', space=sflag, size = 0x4, scoped, tag = 'scoped memory for tpu_custom_call.1']
    #allocation4 [shape = 's32[1]{0}', space=sflag, size = 0x4, scoped, tag = 'scoped memory for tpu_custom_call.1']
    #allocation5 [shape = 'u8[512]{0}', space=smem, size = 0x200, scoped, tag = 'output window, operand 0, single buffered']
    %6 = vsyncpa [#allocation3], 0
    %7 = vsyncpa [#allocation4], 0
    // Predicated region
    $region2: #{tpu_custom_call.1} parent=1 // pred_check
      _
    $region3: #{tpu_custom_call.1} parent=1 // pred_check_branch
      %9 = sbr.rel (0) target = $region5
    $region4: #{tpu_custom_call.1} parent=1 // pred_region
      %11 = vsyncadd [#allocation3], 0
      %s12 = sshll.u32 %s0, 4
      %s13 = int_to_ptr.hbm [resolvable:$true] %s12
      %s14 = sshll.u32 [#allocation2], 4
      %s15 = int_to_ptr.vmem [resolvable:$true] %s14
      %20 = dma.hbm_to_vmem [thread:$0]  %s13, 512, %s15, [#allocation3], 128, 128, 8
    $region5: #{tpu_custom_call.1} parent=1 // pred_fallthru
      _
    // Predicated region
    $region6: #{tpu_custom_call.1} parent=1 // pred_check
      _
    $region7: #{tpu_custom_call.1} parent=1 // pred_check_branch
      %22 = sbr.rel (0) target = $region9
    $region8: #{tpu_custom_call.1} parent=1 // pred_region
      %24 = dma.done [#allocation3], 512
    $region9: #{tpu_custom_call.1} parent=1 // pred_fallthru
      _
    %v25 = vld [vmem:[#allocation2] sm:$0xff]
    %v26 = vld [vmem:[#allocation2 + $0x8] sm:$0xff]
    %v27 = vld [vmem:[#allocation2 + $0x10] sm:$0xff]
    %v28 = vld [vmem:[#allocation2 + $0x18] sm:$0xff]
    %vm29 = vcmask 261120
    %v31 = vsel %vm29, %v25, 0
    %v34 = vsel %vm29, %v26, 0
    %v37 = vsel %vm29, %v27, 0
    %v40 = vsel %vm29, %v28, 0
    %42 = vmatpush.xpose.msra.mxu0 0.0
    %43 = vmatpush.xpose.msra.mxu0 0.0
    %44 = vmatpush.xpose.msra.mxu0 0.0
    %45 = vmatpush.xpose.msra.mxu0 0.0
    %46 = vmatpush.xpose.msra.mxu0 0.0
    %47 = vmatpush.xpose.msra.mxu0 0.0
    %48 = vmatpush.xpose.msra.mxu0 0.0
    %49 = vmatpush.xpose.msra.mxu0 0.0
    %50 = vmatpush.xpose.msra.mxu0 0.0
    %51 = vmatpush.xpose.msra.mxu0 0.0
    %52 = vmatpush.xpose.msra.mxu0 0.0
    %53 = vmatpush.xpose.msra.mxu0 0.0
    %54 = vmatpush.xpose.msra.mxu0 %v40
    %55 = vmatpush.xpose.msra.mxu0 %v37
    %56 = vmatpush.xpose.msra.mxu0 %v34
    %57 = vmatpush.xpose.msra.mxu0 %v31
    %58 = vmatmul.f32.gmra.mxu0 %v31
    %v59 = vpop.f32.mrf.mxu0
    %v60 = vadd.f32 0.0, %v59
    %61 = vmatmul.f32.gmra.mxu0 %v34
    %v62 = vpop.f32.mrf.mxu0
    %v63 = vadd.f32 0.0, %v62
    %64 = vmatmul.f32.gmra.mxu0 %v37
    %v65 = vpop.f32.mrf.mxu0
    %v66 = vadd.f32 0.0, %v65
    %67 = vmatmul.f32.gmra.mxu0 %v40
    %v68 = vpop.f32.mrf.mxu0
    %v69 = vadd.f32 0.0, %v68
    %70 = vdwg.mxu0
    %v71 = vmul.f32 %v25, %v25
    %v72 = vmul.f32 %v26, %v26
    %v73 = vmul.f32 %v27, %v27
    %v74 = vmul.f32 %v28, %v28
    %v75 = vsel %vm29, %v71, 0.0
    %76 = vadd.xlane.f32.xlu0 %v75
    %v77 = vpop.xlane.xlu0 %76
    %v78 = vsel %vm29, %v72, 0.0
    %79 = vadd.xlane.f32.xlu0 %v78
    %v80 = vpop.xlane.xlu0 %79
    %v81 = vsel %vm29, %v73, 0.0
    %82 = vadd.xlane.f32.xlu0 %v81
    %v83 = vpop.xlane.xlu0 %82
    %v84 = vsel %vm29, %v74, 0.0
    %85 = vadd.xlane.f32.xlu0 %v84
    %v86 = vpop.xlane.xlu0 %85
    %v87 = vmul.f32 %v77, 0.5
    %v88 = vmul.f32 %v80, 0.5
    %v89 = vmul.f32 %v83, 0.5
    %v90 = vmul.f32 %v86, 0.5
    %91 = vxpose.xlu0.b32.start [1/16] %v87, 128
    %92 = vxpose.xlu0.b32.cont [2/16] %v88, 128
    %93 = vxpose.xlu0.b32.cont [3/16] %v89, 128
    %94 = vxpose.xlu0.b32.cont [4/16] %v90, 128
    %95 = vxpose.xlu0.b32.cont [5/16] 0.0, 128
    %96 = vxpose.xlu0.b32.cont [6/16] 0.0, 128
    %97 = vxpose.xlu0.b32.cont [7/16] 0.0, 128
    %98 = vxpose.xlu0.b32.cont [8/16] 0.0, 128
    %99 = vxpose.xlu0.b32.cont [9/16] 0.0, 128
    %100 = vxpose.xlu0.b32.cont [10/16] 0.0, 128
    %101 = vxpose.xlu0.b32.cont [11/16] 0.0, 128
    %102 = vxpose.xlu0.b32.cont [12/16] 0.0, 128
    %103 = vxpose.xlu0.b32.cont [13/16] 0.0, 128
    %104 = vxpose.xlu0.b32.cont [14/16] 0.0, 128
    %105 = vxpose.xlu0.b32.cont [15/16] 0.0, 128
    %106 = vxpose.xlu0.b32.end [16/16] 0.0, 128
    %v107 = vpop.trf.xlu0
    %v108 = vpop.trf.xlu0
    %v109 = vpop.trf.xlu0
    %v110 = vpop.trf.xlu0
    %v111 = vpop.trf.xlu0
    %v112 = vpop.trf.xlu0
    %v113 = vpop.trf.xlu0
    %v114 = vpop.trf.xlu0
    %v115 = vpop.trf.xlu0
    %v116 = vpop.trf.xlu0
    %v117 = vpop.trf.xlu0
    %v118 = vpop.trf.xlu0
    %v119 = vpop.trf.xlu0
    %v120 = vpop.trf.xlu0
    %v121 = vpop.trf.xlu0
    %v122 = vpop.trf.xlu0
    %v123 = vsub.f32 %v60, %v87
    %v124 = vsub.f32 %v63, %v88
    %v125 = vsub.f32 %v66, %v89
    %v126 = vsub.f32 %v69, %v90
    %v127 = vperm.slane %v107, 0
    %v128 = vsub.f32 %v123, %v127
    %v129 = vsub.f32 %v124, %v127
    %v130 = vsub.f32 %v125, %v127
    %v131 = vsub.f32 %v126, %v127
    %v132 = vmin.f32 %v128, 0.0
    %v133 = vmin.f32 %v129, 0.0
    %v134 = vmin.f32 %v130, 0.0
    %v135 = vmin.f32 %v131, 0.0
    %v136 = vmul.f32 %v132, 1.442695
    %v137 = vpow.pop %v136
    %v138 = vmul.f32 %v133, 1.442695
    %v139 = vpow.pop %v138
    %v140 = vmul.f32 %v134, 1.442695
    %v141 = vpow.pop %v140
    %v142 = vmul.f32 %v135, 1.442695
    %v143 = vpow.pop %v142
    %v144 = vadd.f32 %v137, 1.0
    %v145 = vadd.f32 %v139, 1.0
    %v146 = vadd.f32 %v141, 1.0
    %v147 = vadd.f32 %v143, 1.0
    %v148 = vmul.f32 %v137, %v144
    %v149 = vmul.f32 %v139, %v145
    %v150 = vmul.f32 %v141, %v146
    %v151 = vmul.f32 %v143, %v147
    %v152 = vlaneseq
    %v153 = vshrl.u32 %v152, 7
    %v154 = vadd.s32 %v153, 8
    %v155 = vadd.s32 %v153, 16
    %v156 = vadd.s32 %v153, 24
    %v157 = vlaneseq
    %v158 = vand.u32 %v157, 127
    %vm159 = vcmp.lt.s32.totalorder %v153, 16
    %vm160 = vcmp.lt.s32.totalorder %v154, 16
    %vm161 = vcmp.lt.s32.totalorder %v155, 16
    %vm162 = vcmp.lt.s32.totalorder %v156, 16
    %vm163 = vcmp.lt.s32.totalorder %v153, 32
    %vm164 = vcmp.lt.s32.totalorder %v154, 32
    %vm165 = vcmp.lt.s32.totalorder %v155, 32
    %vm166 = vcmp.lt.s32.totalorder %v156, 32
    %v167 = vsel %vm163, -0.0625, 0.0
    %v168 = vsel %vm164, -0.0625, 0.0
    %v169 = vsel %vm165, -0.0625, 0.0
    %v170 = vsel %vm166, -0.0625, 0.0
    %v171 = vsel %vm159, 0.0625, %v167
    %v172 = vsel %vm160, 0.0625, %v168
    %v173 = vsel %vm161, 0.0625, %v169
    %v174 = vsel %vm162, 0.0625, %v170
    %vm175 = vcmp.lt.s32.totalorder %v158, 16
    %vm176 = vcmp.lt.s32.totalorder %v158, 32
    %v177 = vsel %vm176, -0.0625, 0.0
    %v178 = vsel %vm175, 0.0625, %v177
    %v179 = vmul.f32 %v148, %v178
    %v180 = vmul.f32 %v149, %v178
    %v181 = vmul.f32 %v150, %v178
    %v182 = vmul.f32 %v151, %v178
    %v183 = vsel %vm29, %v179, 0.0
    %184 = vadd.xlane.f32.xlu0 %v183
    %v185 = vpop.xlane.xlu0 %184
    %v186 = vsel %vm29, %v180, 0.0
    %187 = vadd.xlane.f32.xlu0 %v186
    %v188 = vpop.xlane.xlu0 %187
    %v189 = vsel %vm29, %v181, 0.0
    %190 = vadd.xlane.f32.xlu0 %v189
    %v191 = vpop.xlane.xlu0 %190
    %v192 = vsel %vm29, %v182, 0.0
    %193 = vadd.xlane.f32.xlu0 %v192
    %v194 = vpop.xlane.xlu0 %193
    %v195 = vmul.f32 %v185, %v171
    %v196 = vmul.f32 %v188, %v172
    %v197 = vmul.f32 %v191, %v173
    %v198 = vmul.f32 %v194, %v174
    %vm199 = vcmask 7168
    %v200 = vsel %vm199, %v195, 0.0
    %v201 = vsel %vm199, %v196, 0.0
    %v202 = vadd.f32 %v200, %v201
    %v203 = vsel %vm199, %v197, 0.0
    %v204 = vadd.f32 %v202, %v203
    %v205 = vsel %vm199, %v198, 0.0
    %v206 = vadd.f32 %v204, %v205
    %207 = vadd.xlane.f32.xlu0 %v206
    %v208 = vpop.xlane.xlu0 %207
    %v209 = vrot.slane %v208, 4
    %v210 = vadd.f32 %v208, %v209
    %v211 = vrot.slane %v210, 2
    %v212 = vadd.f32 %v210, %v211
    %v213 = vrot.slane %v212, 1
    %v214 = vadd.f32 %v212, %v213
    %s215 = vtos %v214
    %s216 = scalar_lea.smem [#allocation5], 0
    %217 = sst [smem:[%s216]] %s215
    // Predicated region
    $region10: #{tpu_custom_call.1} parent=1 // pred_check
      _
    $region11: #{tpu_custom_call.1} parent=1 // pred_check_branch
      %219 = sbr.rel (0) target = $region13
    $region12: #{tpu_custom_call.1} parent=1 // pred_region
      %221 = vsyncadd [#allocation4], 0
      %s223 = sshll.u32 %s1, 4
      %s224 = int_to_ptr.hbm [resolvable:$true] %s223
      %226 = dma.smem_to_hbm [#allocation5], 16, %s224, [#allocation4]
    $region13: #{tpu_custom_call.1} parent=1 // pred_fallthru
      _
    // Predicated region
    $region14: #{tpu_custom_call.1} parent=1 // pred_check
      _
    $region15: #{tpu_custom_call.1} parent=1 // pred_check_branch
      %228 = sbr.rel (0) target = $region17
    $region16: #{tpu_custom_call.1} parent=1 // pred_region
      %230 = dma.done [#allocation4], 16
    $region17: #{tpu_custom_call.1} parent=1 // pred_fallthru
      _
    %231 = sfence
    %232 = vsyncpa [#allocation3], 1
    %233 = vsyncpa [#allocation4], 1

</llo_original>
